<compile_context>
chip_gen: v5e
topology: v5e:2x2
jax: 0.10.0
libtpu: 0.0.40
codegen_flags: <defaults>
</compile_context>

<pallas_src>
from functools import partial

import jax
import jax.numpy as jnp
from jax.experimental import pallas as pl
from jax.experimental.pallas import tpu as pltpu


def _vq_kernel(x_ref, e_ref, esq_ref, q_ref, loss_ref, *, hw_total, masked):
    # x_ref:    (1, D, t_hw)  NCHW-native tile: D on sublanes, H*W on lanes
    # e_ref:    (K, D)        codebook (VMEM resident, constant index_map)
    # esq_ref:  (K, 1)        ||E_k||^2
    # q_ref:    (1, D, t_hw)  quantized tile, written straight back in NCHW
    # loss_ref: (1, 1, 1, 1)  per-tile partial sum of squared errors
    x = x_ref[0].astype(jnp.float32)                      # (D, t_hw)
    e = e_ref[...].astype(jnp.float32)                    # (K, D)
    K = e.shape[0]
    t_hw = x.shape[1]

    # scores = E @ x  (contract D) -> (K, t_hw) on the MXU.
    scores = jax.lax.dot_general(
        e, x, (((1,), (0,)), ((), ())), preferred_element_type=jnp.float32)
    # per-position ||x||^2 is a constant per lane -> omitted (argmin-invariant)
    dist = esq_ref[...] - 2.0 * scores                    # (K, t_hw)

    # First-occurrence argmin over K (sublane axis) via the iota-min trick.
    min_d = jnp.min(dist, axis=0, keepdims=True)          # (1, t_hw)
    row = jax.lax.broadcasted_iota(jnp.int32, (K, t_hw), 0)
    idx = jnp.min(jnp.where(dist <= min_d, row, K), axis=0, keepdims=True)

    one_hot = (row == idx).astype(jnp.float32)            # (K, t_hw)
    # quant = E^T @ one_hot  (contract K) -> (D, t_hw): exact codebook lookup.
    quant = jax.lax.dot_general(
        e, one_hot, (((0,), (0,)), ((), ())), preferred_element_type=jnp.float32)
    q_ref[0] = quant.astype(q_ref.dtype)

    err = quant - x
    if masked:  # ragged H*W tail: exclude out-of-range lanes from the loss
        lane = (jax.lax.broadcasted_iota(jnp.int32, (1, t_hw), 1)
                + pl.program_id(1) * t_hw)
        err = jnp.where(lane < hw_total, err, 0.0)
    loss_ref[...] = jnp.sum(err * err).reshape(1, 1, 1, 1)


def vq_embedding_forward(z_e_x, embedding, *, block_hw=1024):
    """z_e_x: (N, D, H, W) float32 (NCHW); embedding: (K, D).
    Returns (quantize (N, D, H, W), latent_loss scalar)."""
    N, D, H, W = z_e_x.shape
    K, D2 = embedding.shape
    assert D == D2, (D, D2)
    HW = H * W

    # Free view: merge trailing spatial dims -> (N, D, H*W). No HBM traffic.
    x3 = z_e_x.reshape(N, D, HW)

    t_hw = HW if HW <= block_hw else block_hw   # block_hw is a multiple of 128
    num_hw = pl.cdiv(HW, t_hw)
    masked = (HW % t_hw) != 0

    e_sq = jnp.sum(embedding.astype(jnp.float32) ** 2, axis=1).reshape(K, 1)

    # VMEM budget: double-buffered x/q tiles, resident codebook, (K, t_hw) temps.
    vmem_est = 4 * (4 * D * t_hw + K * D + K + 6 * K * t_hw)
    vmem_limit = int(min(64 * 1024 * 1024, max(32 * 1024 * 1024, 2 * vmem_est)))

    quant3, loss_parts = pl.pallas_call(
        partial(_vq_kernel, hw_total=HW, masked=masked),
        out_shape=(
            jax.ShapeDtypeStruct((N, D, HW), z_e_x.dtype),
            jax.ShapeDtypeStruct((N, num_hw, 1, 1), jnp.float32),
        ),
        grid=(N, num_hw),
        in_specs=[
            pl.BlockSpec((1, D, t_hw), lambda n, t: (n, 0, t)),   # input tile
            pl.BlockSpec((K, D), lambda n, t: (0, 0)),            # codebook
            pl.BlockSpec((K, 1), lambda n, t: (0, 0)),            # ||E||^2
        ],
        out_specs=(
            pl.BlockSpec((1, D, t_hw), lambda n, t: (n, 0, t)),   # quantized tile
            pl.BlockSpec((1, 1, 1, 1), lambda n, t: (n, t, 0, 0)),  # loss partial
        ),
        compiler_params=pltpu.CompilerParams(
            dimension_semantics=("parallel", "parallel"),
            vmem_limit_bytes=vmem_limit),
    )(x3, embedding, e_sq)

    latent_loss = jnp.sum(loss_parts) / (N * HW * D)
    quantize = quant3.reshape(N, D, H, W)   # free view back to NCHW
    # TODO(synk): training-mode EMA cluster_size / ema_w codebook updates are
    # stateful buffer mutations (not forward math) and are not implemented;
    # the straight-through output equals `quantize` in value.
    return quantize, latent_loss


def _reference(z_e_x, emb):
    N, D, H, W = z_e_x.shape
    inputs = jnp.transpose(z_e_x, (0, 2, 3, 1))
    flatten = inputs.reshape(-1, D)
    dist = (jnp.sum(flatten ** 2, axis=1, keepdims=True)
            + jnp.sum(emb ** 2, axis=1)
            - 2.0 * flatten @ emb.T)
    idx = jnp.argmin(dist, axis=1)
    quant = emb[idx].reshape(inputs.shape)
    loss = jnp.mean((quant - inputs) ** 2)
    return jnp.transpose(quant, (0, 3, 1, 2)), loss


if __name__ == "__main__":
    # Small deterministic setup: N=2, D=32 (embedding dim), H=W=16, K=64 codes
    N, D, H, W = 2, 32, 16, 16
    K = 64

    key = jax.random.PRNGKey(0)
    kx, ke = jax.random.split(key)
    z_e_x = jax.random.normal(kx, (N, D, H, W), dtype=jnp.float32)
    emb = jax.random.normal(ke, (K, D), dtype=jnp.float32)  # embedding.weight.normal_()

    out, loss = vq_embedding_forward(z_e_x, emb)
    out = jax.block_until_ready(out)
    loss = jax.block_until_ready(loss)

    ref_out, ref_loss = _reference(z_e_x, emb)
    assert out.shape == (N, D, H, W), out.shape
    assert jnp.allclose(out, ref_out, atol=1e-5, rtol=1e-5), float(
        jnp.max(jnp.abs(out - ref_out)))
    assert jnp.allclose(loss, ref_loss, atol=1e-5, rtol=1e-5), (
        float(loss), float(ref_loss))

    print("KERNEL_OK")
</pallas_src>

<mosaic_0001>
module attributes {stable_mosaic.version = 11 : i64} {
  func.func @_vq_kernel(%arg0: i32, %arg1: i32, %arg2: memref<1x32x256xf32, #tpu.memory_space<vmem>>, %arg3: memref<64x32xf32, #tpu.memory_space<vmem>>, %arg4: memref<64x1xf32, #tpu.memory_space<vmem>>, %arg5: memref<1x32x256xf32, #tpu.memory_space<vmem>>, %arg6: memref<1x1x1x1xf32, #tpu.memory_space<vmem>>) attributes {dimension_semantics = [#tpu.dimension_semantics<parallel>, #tpu.dimension_semantics<parallel>], iteration_bounds = array<i64: 2, 1>, scalar_prefetch = 0 : i64, scratch_operands = 0 : i64, tpu.core_type = #tpu.core_type<tc>, window_params = [{transform_indices = @transform_0, window_bounds = array<i64: 1, 32, 256>}, {pipeline_mode = #tpu.pipeline_mode<synchronous>, transform_indices = @transform_1, window_bounds = array<i64: 64, 32>}, {pipeline_mode = #tpu.pipeline_mode<synchronous>, transform_indices = @transform_2, window_bounds = array<i64: 64, 1>}, {transform_indices = @transform_3, window_bounds = array<i64: 1, 32, 256>}, {transform_indices = @transform_4, window_bounds = array<i64: 1, 1, 1, 1>}]} {
    %c0 = arith.constant 0 : index
    %c0_0 = arith.constant 0 : index
    %c0_1 = arith.constant 0 : index
    %0 = vector.load %arg2[%c0, %c0_0, %c0_1] : memref<1x32x256xf32, #tpu.memory_space<vmem>>, vector<1x32x256xf32>
    %1 = vector.shape_cast %0 : vector<1x32x256xf32> to vector<32x256xf32>
    %c0_2 = arith.constant 0 : index
    %c0_3 = arith.constant 0 : index
    %2 = vector.load %arg3[%c0_2, %c0_3] : memref<64x32xf32, #tpu.memory_space<vmem>>, vector<64x32xf32>
    %cst = arith.constant dense<0.000000e+00> : vector<64x256xf32>
    %3 = tpu.matmul %2, %1, %cst {dimension_numbers = #tpu.dot_dimension_numbers<[1], [0], [0], [1], [0, 0, 1, 1], [], []>} : vector<64x32xf32>, vector<32x256xf32>, vector<64x256xf32> -> vector<64x256xf32>
    %c0_4 = arith.constant 0 : index
    %c0_5 = arith.constant 0 : index
    %4 = vector.load %arg4[%c0_4, %c0_5] : memref<64x1xf32, #tpu.memory_space<vmem>>, vector<64x1xf32>
    %cst_6 = arith.constant 2.000000e+00 : f32
    %5 = vector.broadcast %cst_6 : f32 to vector<64x256xf32>
    %6 = arith.mulf %5, %3 : vector<64x256xf32>
    %7 = vector.broadcast %4 : vector<64x1xf32> to vector<64x256xf32>
    %8 = arith.subf %7, %6 : vector<64x256xf32>
    %cst_7 = arith.constant dense<0x7F800000> : vector<256xf32>
    %9 = vector.multi_reduction <minimumf>, %8, %cst_7 [0] : vector<64x256xf32> to vector<256xf32>
    %10 = vector.shape_cast %9 : vector<256xf32> to vector<1x256xf32>
    %11 = tpu.iota {dimensions = array<i32: 0>} : vector<64x256xi32>
    %12 = vector.broadcast %10 : vector<1x256xf32> to vector<64x256xf32>
    %13 = arith.cmpf ole, %8, %12 : vector<64x256xf32>
    %c64_i32 = arith.constant 64 : i32
    %14 = vector.broadcast %c64_i32 : i32 to vector<64x256xi32>
    %15 = arith.select %13, %11, %14 : vector<64x256xi1>, vector<64x256xi32>
    %cst_8 = arith.constant dense<2147483647> : vector<256xi32>
    %16 = vector.multi_reduction <minsi>, %15, %cst_8 [0] : vector<64x256xi32> to vector<256xi32>
    %17 = vector.shape_cast %16 : vector<256xi32> to vector<1x256xi32>
    %18 = vector.broadcast %17 : vector<1x256xi32> to vector<64x256xi32>
    %19 = arith.cmpi eq, %11, %18 : vector<64x256xi32>
    %20 = arith.extui %19 : vector<64x256xi1> to vector<64x256xi32>
    %21 = arith.sitofp %20 : vector<64x256xi32> to vector<64x256xf32>
    %cst_9 = arith.constant dense<0.000000e+00> : vector<32x256xf32>
    %22 = tpu.matmul %2, %21, %cst_9 {dimension_numbers = #tpu.dot_dimension_numbers<[0], [0], [1], [1], [0, 1, 1, 1], [], []>} : vector<64x32xf32>, vector<64x256xf32>, vector<32x256xf32> -> vector<32x256xf32>
    %c0_10 = arith.constant 0 : index
    %c0_11 = arith.constant 0 : index
    %c0_12 = arith.constant 0 : index
    %23 = vector.load %arg5[%c0_10, %c0_11, %c0_12] : memref<1x32x256xf32, #tpu.memory_space<vmem>>, vector<1x32x256xf32>
    %24 = vector.shape_cast %23 : vector<1x32x256xf32> to vector<32x256xf32>
    %25 = vector.shape_cast %22 : vector<32x256xf32> to vector<1x32x256xf32>
    tpu.vector_store %arg5[%c0_10, %c0_11, %c0_12], %25 {strides = array<i32>} : memref<1x32x256xf32, #tpu.memory_space<vmem>>, vector<1x32x256xf32>,
    %26 = arith.subf %22, %1 : vector<32x256xf32>
    %27 = arith.mulf %26, %26 : vector<32x256xf32>
    %28 = vector.shape_cast %27 : vector<32x256xf32> to vector<1x32x256xf32>
    %cst_13 = arith.constant dense<0.000000e+00> : vector<1xf32>
    %29 = vector.multi_reduction <add>, %28, %cst_13 [1, 2] : vector<1x32x256xf32> to vector<1xf32>
    %30 = vector.shape_cast %29 : vector<1xf32> to vector<1x1x1xf32>
    %31 = vector.extract %30[0, 0, 0] : f32 from vector<1x1x1xf32>
    %32 = vector.broadcast %31 : f32 to vector<1x1x1x1xf32>
    %c0_14 = arith.constant 0 : index
    %c0_15 = arith.constant 0 : index
    %c0_16 = arith.constant 0 : index
    %c0_17 = arith.constant 0 : index
    %33 = vector.load %arg6[%c0_14, %c0_15, %c0_16, %c0_17] : memref<1x1x1x1xf32, #tpu.memory_space<vmem>>, vector<1x1x1x1xf32>
    tpu.vector_store %arg6[%c0_14, %c0_15, %c0_16, %c0_17], %32 {strides = array<i32>} : memref<1x1x1x1xf32, #tpu.memory_space<vmem>>, vector<1x1x1x1xf32>,
    return
  }
  func.func @transform_0(%arg0: i32, %arg1: i32) -> (i32, i32, i32) {
    %c0_i32 = arith.constant 0 : i32
    %c0_i32_0 = arith.constant 0 : i32
    return %arg0, %c0_i32, %arg1 : i32, i32, i32
  }
  func.func @transform_1(%arg0: i32, %arg1: i32) -> (i32, i32) {
    %c0_i32 = arith.constant 0 : i32
    %c0_i32_0 = arith.constant 0 : i32
    %c0_i32_1 = arith.constant 0 : i32
    return %c0_i32, %c0_i32_0 : i32, i32
  }
  func.func @transform_2(%arg0: i32, %arg1: i32) -> (i32, i32) {
    %c0_i32 = arith.constant 0 : i32
    %c0_i32_0 = arith.constant 0 : i32
    %c0_i32_1 = arith.constant 0 : i32
    return %c0_i32, %c0_i32_0 : i32, i32
  }
  func.func @transform_3(%arg0: i32, %arg1: i32) -> (i32, i32, i32) {
    %c0_i32 = arith.constant 0 : i32
    %c0_i32_0 = arith.constant 0 : i32
    return %arg0, %c0_i32, %arg1 : i32, i32, i32
  }
  func.func @transform_4(%arg0: i32, %arg1: i32) -> (i32, i32, i32, i32) {
    %c0_i32 = arith.constant 0 : i32
    %c0_i32_0 = arith.constant 0 : i32
    %c0_i32_1 = arith.constant 0 : i32
    return %arg0, %arg1, %c0_i32, %c0_i32_0 : i32, i32, i32, i32
  }
}

</mosaic_0001>

<llo_original>
// kernel: tpu_custom_call.1
$region0: #{tpu_custom_call.1}
  #allocation0 [shape = 'u32[]', space=smem, size = 0x4, offset = 0x4, fixed_abs, tag = 'smem constant byte address 0x4 - core index']
  #allocation1 [shape = 'u32[72,128]{1,0:T(1,128)}', space=vmem, size = 0x9000, scoped, tag = 'internal scratch']
  %s0 = inlined_call_operand.vmem [shape: f32[2,32,256], index: 0, kind: input, shape index: {}]
  %s1 = inlined_call_operand.vmem [shape: f32[64,32], index: 1, kind: input, shape index: {}]
  %s2 = inlined_call_operand.vmem [shape: f32[64,1], index: 2, kind: input, shape index: {}]
  %s3 = inlined_call_operand.hbm [shape: f32[2,32,256], index: 3, kind: output, shape index: {0}]
  %s4 = inlined_call_operand.vmem [shape: f32[2,1,1,1], index: 4, kind: output, shape index: {1}]
  %5 = xla_tuple %s3, %s4
  %s6 = sld [smem:[#allocation0]]
  $region53: #{tpu_custom_call.1} parent=0
    _
  %s8 = ssub.s32 1, %s6
  %s9 = scalar_select 0, %s8, %s6
  $region1: #{tpu_custom_call.1} parent=0
    #allocation2 [shape = 'u8[65536]{0}', space=vmem, size = 0x10000, scoped, tag = 'output window, operand 0']
    #allocation3 [shape = 's32[2]{0}', space=sflag, size = 0x8, scoped, tag = 'scoped memory for tpu_custom_call.1']
    %10 = vsyncpa [#allocation3], 0
    %s11 = scalar_lea.sflag [#allocation3], 1
    %12 = vsyncpa %s11, 0
    loop: start=0, step=1, limit=4
    $region2: #{tpu_custom_call.1} parent=1 // loop_pre_header
      _
    $region3: #{tpu_custom_call.1} parent=1 // loop_header
      %s14 = sphi 0, %s18
      %p15 = scmp.ge.s32.totalorder %s14, 4
      %s21 = sphi 0, %s33
      %s22 = sphi 0, %s29
      %s23 = sphi 0, %s21
      %s24 = sphi 0, %s22
      %s25 = sphi 0, %s23
      %s26 = sphi 0, %s24
      %s38 = sphi 0, %s40
      %s41 = sphi 0, %s38
      %s42 = sphi 0, %s41
      %s58 = sphi 0, %s42
      %s62 = sphi 0, %s62
      %s64 = sphi 0, %s62
      %s65 = sphi 0, %s64
      %s79 = sphi 0, %s65
      %s83 = sphi 0, %s83
      %s85 = sphi 0, %s83
      %s86 = sphi 0, %s85
      %s100 = sphi 0, %s86
      %s108 = sphi 0, %s110
      %s111 = sphi 0, %s108
      %s112 = sphi 0, %s111
      %s128 = sphi 0, %s112
      %s136 = sphi 0, %s138
      %s139 = sphi 0, %s136
      %s140 = sphi 0, %s139
      %s156 = sphi 0, %s140
    $region4: #{tpu_custom_call.1} parent=1 // loop_header_branch
      %17 = sbr.rel (%p15) target = $region8
    $region5: #{tpu_custom_call.1} parent=1 // loop_body
      %s19 = ssub.s32 %s14, 1
      %s20 = ssub.s32 %s14, 2
      %s27 = sadd.s32 1, %s22
      %p28 = scmp.ge.s32.totalorder %s27, 1
      %s29 = scalar_select %p28, 0, %s27
      %s30 = sadd.s32 1, %s21
      %s31 = scalar_select %p28, %s30, %s21
      %p32 = scmp.ge.s32.totalorder %s31, 2
      %s33 = scalar_select %p32, 0, %s31
      %s34 = ssub.s32 %s21, %s33
      %s35 = ssub.s32 %s22, %s29
      %s36 = sor.u32 %s34, %s35
      %p37 = scmp.eq.s32.totalorder %s36, 0
      %s39 = sadd.s32 %s38, 1
      %s40 = scalar_select %p37, %s38, %s39
      %p43 = pneg %p37
      %p44 = scmp.eq.s32.totalorder %s14, 1
      %p45 = por %p43, %p44
      %p46 = scmp.ne.s32.totalorder %s38, %s41
      %p47 = scmp.eq.s32.totalorder %s14, 0
      %p48 = por %p46, %p47
      %p49 = scmp.ne.s32.totalorder %s38, %s41
      %p50 = scmp.eq.s32.totalorder %s19, 1
      %p51 = por %p49, %p50
      %p52 = scmp.ne.s32.totalorder %s41, %s42
      %p53 = scmp.eq.s32.totalorder %s19, 0
      %p54 = por %p52, %p53
      %p55 = scmp.ne.s32.totalorder %s41, %s42
      %p56 = scmp.eq.s32.totalorder %s20, 1
      %p57 = por %p55, %p56
      %p59 = scmp.ne.s32.totalorder %s42, %s58
      %p60 = scmp.eq.s32.totalorder %s20, 0
      %p61 = por %p59, %p60
      %s63 = sadd.s32 %s62, 1
      %p66 = scmp.eq.s32.totalorder %s14, 1
      %p67 = scmp.ne.s32.totalorder %s62, %s64
      %p68 = scmp.eq.s32.totalorder %s14, 0
      %p69 = por %p67, %p68
      %p70 = scmp.ne.s32.totalorder %s62, %s64
      %p71 = scmp.eq.s32.totalorder %s19, 1
      %p72 = por %p70, %p71
      %p73 = scmp.ne.s32.totalorder %s64, %s65
      %p74 = scmp.eq.s32.totalorder %s19, 0
      %p75 = por %p73, %p74
      %p76 = scmp.ne.s32.totalorder %s64, %s65
      %p77 = scmp.eq.s32.totalorder %s20, 1
      %p78 = por %p76, %p77
      %p80 = scmp.ne.s32.totalorder %s65, %s79
      %p81 = scmp.eq.s32.totalorder %s20, 0
      %p82 = por %p80, %p81
      %s84 = sadd.s32 %s83, 1
      %p87 = scmp.eq.s32.totalorder %s14, 1
      %p88 = scmp.ne.s32.totalorder %s83, %s85
      %p89 = scmp.eq.s32.totalorder %s14, 0
      %p90 = por %p88, %p89
      %p91 = scmp.ne.s32.totalorder %s83, %s85
      %p92 = scmp.eq.s32.totalorder %s19, 1
      %p93 = por %p91, %p92
      %p94 = scmp.ne.s32.totalorder %s85, %s86
      %p95 = scmp.eq.s32.totalorder %s19, 0
      %p96 = por %p94, %p95
      %p97 = scmp.ne.s32.totalorder %s85, %s86
      %p98 = scmp.eq.s32.totalorder %s20, 1
      %p99 = por %p97, %p98
      %p101 = scmp.ne.s32.totalorder %s86, %s100
      %p102 = scmp.eq.s32.totalorder %s20, 0
      %p103 = por %p101, %p102
      %s104 = ssub.s32 %s21, %s33
      %s105 = ssub.s32 %s22, %s29
      %s106 = sor.u32 %s104, %s105
      %p107 = scmp.eq.s32.totalorder %s106, 0
      %s109 = sadd.s32 %s108, 1
      %s110 = scalar_select %p107, %s108, %s109
      %p113 = pneg %p107
      %p114 = scmp.eq.s32.totalorder %s14, 1
      %p115 = por %p113, %p114
      %p116 = scmp.ne.s32.totalorder %s108, %s111
      %p117 = scmp.eq.s32.totalorder %s14, 0
      %p118 = por %p116, %p117
      %p119 = scmp.ne.s32.totalorder %s108, %s111
      %p120 = scmp.eq.s32.totalorder %s19, 1
      %p121 = por %p119, %p120
      %p122 = scmp.ne.s32.totalorder %s111, %s112
      %p123 = scmp.eq.s32.totalorder %s19, 0
      %p124 = por %p122, %p123
      %p125 = scmp.ne.s32.totalorder %s111, %s112
      %p126 = scmp.eq.s32.totalorder %s20, 1
      %p127 = por %p125, %p126
      %p129 = scmp.ne.s32.totalorder %s112, %s128
      %p130 = scmp.eq.s32.totalorder %s20, 0
      %p131 = por %p129, %p130
      %s132 = ssub.s32 %s21, %s33
      %s133 = ssub.s32 %s22, %s29
      %s134 = sor.u32 %s132, %s133
      %p135 = scmp.eq.s32.totalorder %s134, 0
      %s137 = sadd.s32 %s136, 1
      %s138 = scalar_select %p135, %s136, %s137
      %p141 = pneg %p135
      %p142 = scmp.eq.s32.totalorder %s14, 1
      %p143 = por %p141, %p142
      %p144 = scmp.ne.s32.totalorder %s136, %s139
      %p145 = scmp.eq.s32.totalorder %s14, 0
      %p146 = por %p144, %p145
      %p147 = scmp.ne.s32.totalorder %s136, %s139
      %p148 = scmp.eq.s32.totalorder %s19, 1
      %p149 = por %p147, %p148
      %p150 = scmp.ne.s32.totalorder %s139, %s140
      %p151 = scmp.eq.s32.totalorder %s19, 0
      %p152 = por %p150, %p151
      %p153 = scmp.ne.s32.totalorder %s139, %s140
      %p154 = scmp.eq.s32.totalorder %s20, 1
      %p155 = por %p153, %p154
      %p157 = scmp.ne.s32.totalorder %s140, %s156
      %p158 = scmp.eq.s32.totalorder %s20, 0
      %p159 = por %p157, %p158
      %p160 = scmp.le.s32.totalorder 1, %s14
      %p161 = scmp.lt.s32.totalorder %s14, 3
      %p162 = pnand %p160, %p161
      %p163 = pneg %p162
      // Predicated region
      $region9: #{tpu_custom_call.1} parent=5 // pred_check
        _
      $region10: #{tpu_custom_call.1} parent=5 // pred_check_branch
        %165 = sbr.rel (%p162) target = $region12
      $region11: #{tpu_custom_call.1} parent=5 // pred_region
        %s166 = ssub.s32 %s14, 1
        // Predicated region
        $region13: #{tpu_custom_call.1} parent=11 // pred_check
          %p167 = pneg %p75
        $region14: #{tpu_custom_call.1} parent=11 // pred_check_branch
          %169 = sbr.rel (%p167) target = $region16
        $region15: #{tpu_custom_call.1} parent=11 // pred_region
          _
        $region16: #{tpu_custom_call.1} parent=11 // pred_fallthru
          _
        // Predicated region
        $region17: #{tpu_custom_call.1} parent=11 // pred_check
          %p170 = pneg %p96
        $region18: #{tpu_custom_call.1} parent=11 // pred_check_branch
          %172 = sbr.rel (%p170) target = $region20
        $region19: #{tpu_custom_call.1} parent=11 // pred_region
          _
        $region20: #{tpu_custom_call.1} parent=11 // pred_fallthru
          _
      $region12: #{tpu_custom_call.1} parent=5 // pred_fallthru
        _
      %p173 = scmp.lt.s32.totalorder %s14, 2
      // Predicated region
      $region21: #{tpu_custom_call.1} parent=5 // pred_check
        %p174 = pneg %p173
      $region22: #{tpu_custom_call.1} parent=5 // pred_check_branch
        %176 = sbr.rel (%p174) target = $region24
      $region23: #{tpu_custom_call.1} parent=5 // pred_region
        // Predicated region
        $region25: #{tpu_custom_call.1} parent=23 // pred_check
          %p177 = pneg %p48
        $region26: #{tpu_custom_call.1} parent=23 // pred_check_branch
          %179 = sbr.rel (%p177) target = $region28
        $region27: #{tpu_custom_call.1} parent=23 // pred_region
          %s180 = smul.u32 2, %s22
          %p181 = scmp.lt.s32.totalorder %s21, 1
          %s182 = scalar_select %p181, %s21, 1
          %p183 = scmp.lt.s32.totalorder %s180, 1
          %s184 = scalar_select %p183, %s180, 1
          %s185 = smul.addr %s182, 8
          %s186 = sadd.s32 %s184, %s185
          %s187 = smul.addr %s186, 8
          %s188 = scalar_lea.vmem %s0, %s187
          %s189 = smul.u32 2, %s22
        $region28: #{tpu_custom_call.1} parent=23 // pred_fallthru
          _
      $region24: #{tpu_custom_call.1} parent=5 // pred_fallthru
        _
      %p190 = scmp.le.s32.totalorder 1, %s14
      %p191 = scmp.lt.s32.totalorder %s14, 3
      %p192 = pnand %p190, %p191
      %p193 = pneg %p192
      // Predicated region
      $region29: #{tpu_custom_call.1} parent=5 // pred_check
        _
      $region30: #{tpu_custom_call.1} parent=5 // pred_check_branch
        %195 = sbr.rel (%p192) target = $region32
      $region31: #{tpu_custom_call.1} parent=5 // pred_region
        %s196 = ssub.s32 %s14, 1
        %s197 = smul.u32 2, %s24
        %p198 = scmp.lt.s32.totalorder %s23, 1
        %s199 = scalar_select %p198, %s23, 1
        %p200 = scmp.lt.s32.totalorder %s197, 1
        %s201 = scalar_select %p200, %s197, 1
        %s202 = smul.addr %s199, 8
        %s203 = sadd.s32 %s201, %s202
        %s204 = smul.addr %s203, 8
        %s205 = scalar_lea.vmem %s0, %s204
        %p206 = pneg %p54
        %p207 = pneg %p51
        %p208 = pneg %p75
        %p209 = pneg %p72
        %p210 = pneg %p96
        %p211 = pneg %p93
        %p212 = pneg %p124
        %p213 = pneg %p121
        %s214 = sand.u32 %s111, 1
        %s215 = scalar_lea.sflag [#allocation3], %s214
        %s216 = sand.u32 %s111, 1
        %s217 = smul.addr %s216, 64
        %s218 = scalar_lea.vmem [#allocation2], %s217
        %p219 = pneg %p152
        %p220 = pneg %p149
        %p221 = scmp.lt.s32.totalorder %s23, 1
        %s222 = scalar_select %p221, %s23, 1
        %p223 = scmp.lt.s32.totalorder %s24, 0
        %s224 = scalar_select %p223, %s24, 0
        %s225 = sadd.s32 %s224, %s222
        %s226 = scalar_lea.vmem %s4, %s225
        %s227 = smul.u32 2, %s24
        %p228 = scmp.lt.s32.totalorder %s23, 1
        %s229 = scalar_select %p228, %s23, 1
        %p230 = scmp.lt.s32.totalorder %s227, 1
        %s231 = scalar_select %p230, %s227, 1
        %s232 = smul.addr %s229, 8
        %s233 = sadd.s32 %s231, %s232
        %s234 = smul.addr %s233, 8
        %s235 = scalar_lea.vmem %s0, %s234
        %s236 = smul.u32 2, %s24
        %s237 = smul.u32 2, %s24
        %p238 = scmp.lt.s32.totalorder %s23, 1
        %s239 = scalar_select %p238, %s23, 1
        %p240 = scmp.lt.s32.totalorder %s24, 0
        %s241 = scalar_select %p240, %s24, 0
        %s242 = sadd.s32 %s241, %s239
        %s243 = scalar_lea.vmem %s4, %s242
        %v244 = vld [vmem:[%s235] sm:$0xff]
        %v245 = vld [vmem:[%s235 + $0x8] sm:$0xff]
        %v246 = vld [vmem:[%s235 + $0x10] sm:$0xff]
        %v247 = vld [vmem:[%s235 + $0x18] sm:$0xff]
        %v248 = vld [vmem:[%s235 + $0x20] sm:$0xff]
        %v249 = vld [vmem:[%s235 + $0x28] sm:$0xff]
        %v250 = vld [vmem:[%s235 + $0x30] sm:$0xff]
        %v251 = vld [vmem:[%s235 + $0x38] sm:$0xff]
        %v252 = vld [vmem:[%s1] sm:$0xff]
        %v253 = vld [vmem:[%s1 + $0x8] sm:$0xff]
        %v254 = vld [vmem:[%s1 + $0x10] sm:$0xff]
        %v255 = vld [vmem:[%s1 + $0x18] sm:$0xff]
        %v256 = vld [vmem:[%s1 + $0x20] sm:$0xff]
        %v257 = vld [vmem:[%s1 + $0x28] sm:$0xff]
        %v258 = vld [vmem:[%s1 + $0x30] sm:$0xff]
        %v259 = vld [vmem:[%s1 + $0x38] sm:$0xff]
        %vm260 = vcmask 261120
        %v262 = vsel %vm260, %v252, 0
        %v265 = vsel %vm260, %v253, 0
        %v268 = vsel %vm260, %v254, 0
        %v271 = vsel %vm260, %v255, 0
        %v274 = vsel %vm260, %v256, 0
        %v277 = vsel %vm260, %v257, 0
        %v280 = vsel %vm260, %v258, 0
        %v283 = vsel %vm260, %v259, 0
        %285 = vmatpush.msra.mxu0 0.0
        %286 = vmatpush.msra.mxu0 0.0
        %287 = vmatpush.msra.mxu0 0.0
        %288 = vmatpush.msra.mxu0 0.0
        %289 = vmatpush.msra.mxu0 0.0
        %290 = vmatpush.msra.mxu0 0.0
        %291 = vmatpush.msra.mxu0 0.0
        %292 = vmatpush.msra.mxu0 0.0
        %293 = vmatpush.msra.mxu0 0.0
        %294 = vmatpush.msra.mxu0 0.0
        %295 = vmatpush.msra.mxu0 0.0
        %296 = vmatpush.msra.mxu0 0.0
        %297 = vmatpush.msra.mxu0 %v250
        %298 = vmatpush.msra.mxu0 %v248
        %299 = vmatpush.msra.mxu0 %v246
        %300 = vmatpush.msra.mxu0 %v244
        %301 = vmatmul.f32.gmra.mxu0 %v262
        %v302 = vpop.f32.mrf.mxu0
        %v303 = vadd.f32 0.0, %v302
        %304 = vmatmul.f32.gmra.mxu0 %v265
        %v305 = vpop.f32.mrf.mxu0
        %v306 = vadd.f32 0.0, %v305
        %307 = vmatmul.f32.gmra.mxu0 %v268
        %v308 = vpop.f32.mrf.mxu0
        %v309 = vadd.f32 0.0, %v308
        %310 = vmatmul.f32.gmra.mxu0 %v271
        %v311 = vpop.f32.mrf.mxu0
        %v312 = vadd.f32 0.0, %v311
        %313 = vmatmul.f32.gmra.mxu0 %v274
        %v314 = vpop.f32.mrf.mxu0
        %v315 = vadd.f32 0.0, %v314
        %316 = vmatmul.f32.gmra.mxu0 %v277
        %v317 = vpop.f32.mrf.mxu0
        %v318 = vadd.f32 0.0, %v317
        %319 = vmatmul.f32.gmra.mxu0 %v280
        %v320 = vpop.f32.mrf.mxu0
        %v321 = vadd.f32 0.0, %v320
        %322 = vmatmul.f32.gmra.mxu0 %v283
        %v323 = vpop.f32.mrf.mxu0
        %v324 = vadd.f32 0.0, %v323
        %325 = vdwg.mxu0
        %326 = vmatpush.msra.mxu0 0.0
        %327 = vmatpush.msra.mxu0 0.0
        %328 = vmatpush.msra.mxu0 0.0
        %329 = vmatpush.msra.mxu0 0.0
        %330 = vmatpush.msra.mxu0 0.0
        %331 = vmatpush.msra.mxu0 0.0
        %332 = vmatpush.msra.mxu0 0.0
        %333 = vmatpush.msra.mxu0 0.0
        %334 = vmatpush.msra.mxu0 0.0
        %335 = vmatpush.msra.mxu0 0.0
        %336 = vmatpush.msra.mxu0 0.0
        %337 = vmatpush.msra.mxu0 0.0
        %338 = vmatpush.msra.mxu0 %v251
        %339 = vmatpush.msra.mxu0 %v249
        %340 = vmatpush.msra.mxu0 %v247
        %341 = vmatpush.msra.mxu0 %v245
        %342 = vmatmul.f32.gmra.mxu0 %v262
        %v343 = vpop.f32.mrf.mxu0
        %v344 = vadd.f32 0.0, %v343
        %345 = vmatmul.f32.gmra.mxu0 %v265
        %v346 = vpop.f32.mrf.mxu0
        %v347 = vadd.f32 0.0, %v346
        %348 = vmatmul.f32.gmra.mxu0 %v268
        %v349 = vpop.f32.mrf.mxu0
        %v350 = vadd.f32 0.0, %v349
        %351 = vmatmul.f32.gmra.mxu0 %v271
        %v352 = vpop.f32.mrf.mxu0
        %v353 = vadd.f32 0.0, %v352
        %354 = vmatmul.f32.gmra.mxu0 %v274
        %v355 = vpop.f32.mrf.mxu0
        %v356 = vadd.f32 0.0, %v355
        %357 = vmatmul.f32.gmra.mxu0 %v277
        %v358 = vpop.f32.mrf.mxu0
        %v359 = vadd.f32 0.0, %v358
        %360 = vmatmul.f32.gmra.mxu0 %v280
        %v361 = vpop.f32.mrf.mxu0
        %v362 = vadd.f32 0.0, %v361
        %363 = vmatmul.f32.gmra.mxu0 %v283
        %v364 = vpop.f32.mrf.mxu0
        %v365 = vadd.f32 0.0, %v364
        %366 = vdwg.mxu0
        %v367 = vld [vmem:[%s2] sm:$0xff]
        %v368 = vld [vmem:[%s2 + $0x8] sm:$0xff]
        %v369 = vld [vmem:[%s2 + $0x10] sm:$0xff]
        %v370 = vld [vmem:[%s2 + $0x18] sm:$0xff]
        %v371 = vld [vmem:[%s2 + $0x20] sm:$0xff]
        %v372 = vld [vmem:[%s2 + $0x28] sm:$0xff]
        %v373 = vld [vmem:[%s2 + $0x30] sm:$0xff]
        %v374 = vld [vmem:[%s2 + $0x38] sm:$0xff]
        %v375 = vmul.f32 %v303, 2.0
        %v376 = vmul.f32 %v344, 2.0
        %v377 = vmul.f32 %v306, 2.0
        %v378 = vmul.f32 %v347, 2.0
        %v379 = vmul.f32 %v309, 2.0
        %v380 = vmul.f32 %v350, 2.0
        %v381 = vmul.f32 %v312, 2.0
        %v382 = vmul.f32 %v353, 2.0
        %v383 = vmul.f32 %v315, 2.0
        %v384 = vmul.f32 %v356, 2.0
        %v385 = vmul.f32 %v318, 2.0
        %v386 = vmul.f32 %v359, 2.0
        %v387 = vmul.f32 %v321, 2.0
        %v388 = vmul.f32 %v362, 2.0
        %v389 = vmul.f32 %v324, 2.0
        %v390 = vmul.f32 %v365, 2.0
        %392 = vset.pattern.permute.xlu0 0
        %393 = vperm.xlu0 %392, %v367
        %v394 = vpop.permute.xlu0 %393
        %397 = vset.pattern.permute.xlu0 0
        %398 = vperm.xlu0 %397, %v368
        %v399 = vpop.permute.xlu0 %398
        %402 = vset.pattern.permute.xlu0 0
        %403 = vperm.xlu0 %402, %v369
        %v404 = vpop.permute.xlu0 %403
        %407 = vset.pattern.permute.xlu0 0
        %408 = vperm.xlu0 %407, %v370
        %v409 = vpop.permute.xlu0 %408
        %412 = vset.pattern.permute.xlu0 0
        %413 = vperm.xlu0 %412, %v371
        %v414 = vpop.permute.xlu0 %413
        %417 = vset.pattern.permute.xlu0 0
        %418 = vperm.xlu0 %417, %v372
        %v419 = vpop.permute.xlu0 %418
        %422 = vset.pattern.permute.xlu0 0
        %423 = vperm.xlu0 %422, %v373
        %v424 = vpop.permute.xlu0 %423
        %427 = vset.pattern.permute.xlu0 0
        %428 = vperm.xlu0 %427, %v374
        %v429 = vpop.permute.xlu0 %428
        %v431 = vsub.f32 %v394, %v375
        %v432 = vsub.f32 %v394, %v376
        %v433 = vsub.f32 %v399, %v377
        %v434 = vsub.f32 %v399, %v378
        %v435 = vsub.f32 %v404, %v379
        %v436 = vsub.f32 %v404, %v380
        %v437 = vsub.f32 %v409, %v381
        %v438 = vsub.f32 %v409, %v382
        %v439 = vsub.f32 %v414, %v383
        %v440 = vsub.f32 %v414, %v384
        %v441 = vsub.f32 %v419, %v385
        %v442 = vsub.f32 %v419, %v386
        %v443 = vsub.f32 %v424, %v387
        %v444 = vsub.f32 %v424, %v388
        %v445 = vsub.f32 %v429, %v389
        %v446 = vsub.f32 %v429, %v390
        %v447 = vmin.f32 %v431, %v435
        %v448 = vmin.f32 %v433, %v437
        %v449 = vmin.f32 %v447, %v439
        %v450 = vmin.f32 %v448, %v441
        %v451 = vmin.f32 %v449, %v443
        %v452 = vmin.f32 %v450, %v445
        %v453 = vmin.f32 %v451, %v452
        %v454 = vrot.slane %v453, 4
        %v455 = vmin.f32 %v453, %v454
        %v456 = vrot.slane %v455, 2
        %v457 = vmin.f32 %v455, %v456
        %v458 = vrot.slane %v457, 1
        %v459 = vmin.f32 %v457, %v458
        %v460 = vmin.f32 %v432, %v436
        %v461 = vmin.f32 %v434, %v438
        %v462 = vmin.f32 %v460, %v440
        %v463 = vmin.f32 %v461, %v442
        %v464 = vmin.f32 %v462, %v444
        %v465 = vmin.f32 %v463, %v446
        %v466 = vmin.f32 %v464, %v465
        %v467 = vrot.slane %v466, 4
        %v468 = vmin.f32 %v466, %v467
        %v469 = vrot.slane %v468, 2
        %v470 = vmin.f32 %v468, %v469
        %v471 = vrot.slane %v470, 1
        %v472 = vmin.f32 %v470, %v471
        %v473 = vlaneseq
        %v474 = vshrl.u32 %v473, 7
        %v475 = vadd.s32 %v474, 8
        %v476 = vadd.s32 %v474, 16
        %v477 = vadd.s32 %v474, 24
        %v478 = vadd.s32 %v474, 32
        %v479 = vadd.s32 %v474, 40
        %v480 = vadd.s32 %v474, 48
        %v481 = vadd.s32 %v474, 56
        %vm482 = vcmp.le.f32.partialorder %v431, %v459
        %vm483 = vcmp.le.f32.partialorder %v432, %v472
        %vm484 = vcmp.le.f32.partialorder %v433, %v459
        %vm485 = vcmp.le.f32.partialorder %v434, %v472
        %vm486 = vcmp.le.f32.partialorder %v435, %v459
        %vm487 = vcmp.le.f32.partialorder %v436, %v472
        %vm488 = vcmp.le.f32.partialorder %v437, %v459
        %vm489 = vcmp.le.f32.partialorder %v438, %v472
        %vm490 = vcmp.le.f32.partialorder %v439, %v459
        %vm491 = vcmp.le.f32.partialorder %v440, %v472
        %vm492 = vcmp.le.f32.partialorder %v441, %v459
        %vm493 = vcmp.le.f32.partialorder %v442, %v472
        %vm494 = vcmp.le.f32.partialorder %v443, %v459
        %vm495 = vcmp.le.f32.partialorder %v444, %v472
        %vm496 = vcmp.le.f32.partialorder %v445, %v459
        %vm497 = vcmp.le.f32.partialorder %v446, %v472
        %v498 = vsel %vm482, %v474, 64
        %v499 = vsel %vm483, %v474, 64
        %v500 = vsel %vm484, %v475, 64
        %v501 = vsel %vm485, %v475, 64
        %v502 = vsel %vm486, %v476, 64
        %v503 = vsel %vm487, %v476, 64
        %v504 = vsel %vm488, %v477, 64
        %v505 = vsel %vm489, %v477, 64
        %v506 = vsel %vm490, %v478, 64
        %v507 = vsel %vm491, %v478, 64
        %v508 = vsel %vm492, %v479, 64
        %v509 = vsel %vm493, %v479, 64
        %v510 = vsel %vm494, %v480, 64
        %v511 = vsel %vm495, %v480, 64
        %v512 = vsel %vm496, %v481, 64
        %v513 = vsel %vm497, %v481, 64
        %vm514 = vcmp.lt.s32.totalorder %v498, %v502
        %v515 = vsel %vm514, %v498, %v502
        %vm516 = vcmp.lt.s32.totalorder %v500, %v504
        %v517 = vsel %vm516, %v500, %v504
        %vm518 = vcmp.lt.s32.totalorder %v515, %v506
        %v519 = vsel %vm518, %v515, %v506
        %vm520 = vcmp.lt.s32.totalorder %v517, %v508
        %v521 = vsel %vm520, %v517, %v508
        %vm522 = vcmp.lt.s32.totalorder %v519, %v510
        %v523 = vsel %vm522, %v519, %v510
        %vm524 = vcmp.lt.s32.totalorder %v521, %v512
        %v525 = vsel %vm524, %v521, %v512
        %vm526 = vcmp.lt.s32.totalorder %v523, %v525
        %v527 = vsel %vm526, %v523, %v525
        %v528 = vrot.slane %v527, 4
        %vm529 = vcmp.lt.s32.totalorder %v527, %v528
        %v530 = vsel %vm529, %v527, %v528
        %v531 = vrot.slane %v530, 2
        %vm532 = vcmp.lt.s32.totalorder %v530, %v531
        %v533 = vsel %vm532, %v530, %v531
        %v534 = vrot.slane %v533, 1
        %vm535 = vcmp.lt.s32.totalorder %v533, %v534
        %v536 = vsel %vm535, %v533, %v534
        %vm537 = vcmp.lt.s32.totalorder %v499, %v503
        %v538 = vsel %vm537, %v499, %v503
        %vm539 = vcmp.lt.s32.totalorder %v501, %v505
        %v540 = vsel %vm539, %v501, %v505
        %vm541 = vcmp.lt.s32.totalorder %v538, %v507
        %v542 = vsel %vm541, %v538, %v507
        %vm543 = vcmp.lt.s32.totalorder %v540, %v509
        %v544 = vsel %vm543, %v540, %v509
        %vm545 = vcmp.lt.s32.totalorder %v542, %v511
        %v546 = vsel %vm545, %v542, %v511
        %vm547 = vcmp.lt.s32.totalorder %v544, %v513
        %v548 = vsel %vm547, %v544, %v513
        %vm549 = vcmp.lt.s32.totalorder %v546, %v548
        %v550 = vsel %vm549, %v546, %v548
        %v551 = vrot.slane %v550, 4
        %vm552 = vcmp.lt.s32.totalorder %v550, %v551
        %v553 = vsel %vm552, %v550, %v551
        %v554 = vrot.slane %v553, 2
        %vm555 = vcmp.lt.s32.totalorder %v553, %v554
        %v556 = vsel %vm555, %v553, %v554
        %v557 = vrot.slane %v556, 1
        %vm558 = vcmp.lt.s32.totalorder %v556, %v557
        %v559 = vsel %vm558, %v556, %v557
        %vm560 = vcmp.eq.s32.totalorder %v474, %v536
        %vm561 = vcmp.eq.s32.totalorder %v474, %v559
        %vm562 = vcmp.eq.s32.totalorder %v475, %v536
        %vm563 = vcmp.eq.s32.totalorder %v475, %v559
        %vm564 = vcmp.eq.s32.totalorder %v476, %v536
        %vm565 = vcmp.eq.s32.totalorder %v476, %v559
        %vm566 = vcmp.eq.s32.totalorder %v477, %v536
        %vm567 = vcmp.eq.s32.totalorder %v477, %v559
        %vm568 = vcmp.eq.s32.totalorder %v478, %v536
        %vm569 = vcmp.eq.s32.totalorder %v478, %v559
        %vm570 = vcmp.eq.s32.totalorder %v479, %v536
        %vm571 = vcmp.eq.s32.totalorder %v479, %v559
        %vm572 = vcmp.eq.s32.totalorder %v480, %v536
        %vm573 = vcmp.eq.s32.totalorder %v480, %v559
        %vm574 = vcmp.eq.s32.totalorder %v481, %v536
        %vm575 = vcmp.eq.s32.totalorder %v481, %v559
        %v576 = vsel %vm560, 1, 0
        %v577 = vsel %vm561, 1, 0
        %v578 = vsel %vm562, 1, 0
        %v579 = vsel %vm563, 1, 0
        %v580 = vsel %vm564, 1, 0
        %v581 = vsel %vm565, 1, 0
        %v582 = vsel %vm566, 1, 0
        %v583 = vsel %vm567, 1, 0
        %v584 = vsel %vm568, 1, 0
        %v585 = vsel %vm569, 1, 0
        %v586 = vsel %vm570, 1, 0
        %v587 = vsel %vm571, 1, 0
        %v588 = vsel %vm572, 1, 0
        %v589 = vsel %vm573, 1, 0
        %v590 = vsel %vm574, 1, 0
        %v591 = vsel %vm575, 1, 0
        %v592 = vcvt.s32.f32 %v576
        %v593 = vcvt.s32.f32 %v577
        %v594 = vcvt.s32.f32 %v578
        %v595 = vcvt.s32.f32 %v579
        %v596 = vcvt.s32.f32 %v580
        %v597 = vcvt.s32.f32 %v581
        %v598 = vcvt.s32.f32 %v582
        %v599 = vcvt.s32.f32 %v583
        %v600 = vcvt.s32.f32 %v584
        %v601 = vcvt.s32.f32 %v585
        %v602 = vcvt.s32.f32 %v586
        %v603 = vcvt.s32.f32 %v587
        %v604 = vcvt.s32.f32 %v588
        %v605 = vcvt.s32.f32 %v589
        %v606 = vcvt.s32.f32 %v590
        %v607 = vcvt.s32.f32 %v591
        %608 = vxpose.xlu0.b32.start [1/16] %v252, 128
        %609 = vxpose.xlu0.b32.cont [2/16] %v253, 128
        %610 = vxpose.xlu0.b32.cont [3/16] %v254, 128
        %611 = vxpose.xlu0.b32.cont [4/16] %v255, 128
        %612 = vxpose.xlu0.b32.cont [5/16] %v256, 128
        %613 = vxpose.xlu0.b32.cont [6/16] %v257, 128
        %614 = vxpose.xlu0.b32.cont [7/16] %v258, 128
        %615 = vxpose.xlu0.b32.cont [8/16] %v259, 128
        %616 = vxpose.xlu0.b32.cont [9/16] 0.0, 128
        %617 = vxpose.xlu0.b32.cont [10/16] 0.0, 128
        %618 = vxpose.xlu0.b32.cont [11/16] 0.0, 128
        %619 = vxpose.xlu0.b32.cont [12/16] 0.0, 128
        %620 = vxpose.xlu0.b32.cont [13/16] 0.0, 128
        %621 = vxpose.xlu0.b32.cont [14/16] 0.0, 128
        %622 = vxpose.xlu0.b32.cont [15/16] 0.0, 128
        %623 = vxpose.xlu0.b32.end [16/16] 0.0, 128
        %v624 = vpop.trf.xlu0
        %v625 = vpop.trf.xlu0
        %v626 = vpop.trf.xlu0
        %v627 = vpop.trf.xlu0
        %v628 = vpop.trf.xlu0
        %v629 = vpop.trf.xlu0
        %v630 = vpop.trf.xlu0
        %v631 = vpop.trf.xlu0
        %v632 = vpop.trf.xlu0
        %v633 = vpop.trf.xlu0
        %v634 = vpop.trf.xlu0
        %v635 = vpop.trf.xlu0
        %v636 = vpop.trf.xlu0
        %v637 = vpop.trf.xlu0
        %v638 = vpop.trf.xlu0
        %v639 = vpop.trf.xlu0
        %vm640 = vcmask 523264
        %v642 = vsel %vm640, %v624, 0
        %v645 = vsel %vm640, %v625, 0
        %v648 = vsel %vm640, %v626, 0
        %v651 = vsel %vm640, %v627, 0
        %653 = vmatpush.msra.mxu0 0.0
        %654 = vmatpush.msra.mxu0 0.0
        %655 = vmatpush.msra.mxu0 0.0
        %656 = vmatpush.msra.mxu0 0.0
        %657 = vmatpush.msra.mxu0 0.0
        %658 = vmatpush.msra.mxu0 0.0
        %659 = vmatpush.msra.mxu0 0.0
        %660 = vmatpush.msra.mxu0 0.0
        %661 = vmatpush.msra.mxu0 %v606
        %662 = vmatpush.msra.mxu0 %v604
        %663 = vmatpush.msra.mxu0 %v602
        %664 = vmatpush.msra.mxu0 %v600
        %665 = vmatpush.msra.mxu0 %v598
        %666 = vmatpush.msra.mxu0 %v596
        %667 = vmatpush.msra.mxu0 %v594
        %668 = vmatpush.msra.mxu0 %v592
        %669 = vmatmul.f32.gmra.mxu0 %v642
        %v670 = vpop.f32.mrf.mxu0
        %v671 = vadd.f32 0.0, %v670
        %672 = vmatmul.f32.gmra.mxu0 %v645
        %v673 = vpop.f32.mrf.mxu0
        %v674 = vadd.f32 0.0, %v673
        %675 = vmatmul.f32.gmra.mxu0 %v648
        %v676 = vpop.f32.mrf.mxu0
        %v677 = vadd.f32 0.0, %v676
        %678 = vmatmul.f32.gmra.mxu0 %v651
        %v679 = vpop.f32.mrf.mxu0
        %v680 = vadd.f32 0.0, %v679
        %681 = vdwg.mxu0
        %682 = vmatpush.msra.mxu0 0.0
        %683 = vmatpush.msra.mxu0 0.0
        %684 = vmatpush.msra.mxu0 0.0
        %685 = vmatpush.msra.mxu0 0.0
        %686 = vmatpush.msra.mxu0 0.0
        %687 = vmatpush.msra.mxu0 0.0
        %688 = vmatpush.msra.mxu0 0.0
        %689 = vmatpush.msra.mxu0 0.0
        %690 = vmatpush.msra.mxu0 %v607
        %691 = vmatpush.msra.mxu0 %v605
        %692 = vmatpush.msra.mxu0 %v603
        %693 = vmatpush.msra.mxu0 %v601
        %694 = vmatpush.msra.mxu0 %v599
        %695 = vmatpush.msra.mxu0 %v597
        %696 = vmatpush.msra.mxu0 %v595
        %697 = vmatpush.msra.mxu0 %v593
        %698 = vmatmul.f32.gmra.mxu0 %v642
        %v699 = vpop.f32.mrf.mxu0
        %v700 = vadd.f32 0.0, %v699
        %701 = vmatmul.f32.gmra.mxu0 %v645
        %v702 = vpop.f32.mrf.mxu0
        %v703 = vadd.f32 0.0, %v702
        %704 = vmatmul.f32.gmra.mxu0 %v648
        %v705 = vpop.f32.mrf.mxu0
        %v706 = vadd.f32 0.0, %v705
        %707 = vmatmul.f32.gmra.mxu0 %v651
        %v708 = vpop.f32.mrf.mxu0
        %v709 = vadd.f32 0.0, %v708
        %710 = vdwg.mxu0
        %711 = vst [vmem:[%s218] sm:$0xff] %v671
        %712 = vst [vmem:[%s218 + $0x8] sm:$0xff] %v700
        %713 = vst [vmem:[%s218 + $0x10] sm:$0xff] %v674
        %714 = vst [vmem:[%s218 + $0x18] sm:$0xff] %v703
        %715 = vst [vmem:[%s218 + $0x20] sm:$0xff] %v677
        %716 = vst [vmem:[%s218 + $0x28] sm:$0xff] %v706
        %717 = vst [vmem:[%s218 + $0x30] sm:$0xff] %v680
        %718 = vst [vmem:[%s218 + $0x38] sm:$0xff] %v709
        %v719 = vsub.f32 %v671, %v244
        %v720 = vsub.f32 %v700, %v245
        %v721 = vsub.f32 %v674, %v246
        %v722 = vsub.f32 %v703, %v247
        %v723 = vsub.f32 %v677, %v248
        %v724 = vsub.f32 %v706, %v249
        %v725 = vsub.f32 %v680, %v250
        %v726 = vsub.f32 %v709, %v251
        %v727 = vmul.f32 %v719, %v719
        %v728 = vmul.f32 %v720, %v720
        %v729 = vmul.f32 %v721, %v721
        %v730 = vmul.f32 %v722, %v722
        %v731 = vmul.f32 %v723, %v723
        %v732 = vmul.f32 %v724, %v724
        %v733 = vmul.f32 %v725, %v725
        %v734 = vmul.f32 %v726, %v726
        %v735 = vadd.f32 %v727, %v728
        %v736 = vadd.f32 %v735, %v729
        %v737 = vadd.f32 %v736, %v730
        %v738 = vadd.f32 %v737, %v731
        %v739 = vadd.f32 %v738, %v732
        %v740 = vadd.f32 %v739, %v733
        %v741 = vadd.f32 %v740, %v734
        %742 = vadd.xlane.f32.xlu0 %v741
        %v743 = vpop.xlane.xlu0 %742
        %v744 = vrot.slane %v743, 4
        %v745 = vadd.f32 %v743, %v744
        %v746 = vrot.slane %v745, 2
        %v747 = vadd.f32 %v745, %v746
        %v748 = vrot.slane %v747, 1
        %v749 = vadd.f32 %v747, %v748
        %s750 = vtos %v749
        %v751 = vstv %s750
        %vm752 = vcmask 0
        %753 = vst.msk [vmem:[%s243] sm:$0x1] %vm752, %v751
        %s754 = sand.u32 %s111, 1
        %s755 = scalar_lea.sflag [#allocation3], %s754
        %s756 = sand.u32 %s111, 1
        %s757 = smul.addr %s756, 64
        %s758 = scalar_lea.vmem [#allocation2], %s757
        %p759 = scmp.lt.s32.totalorder %s23, 1
        %s760 = scalar_select %p759, %s23, 1
        %p761 = scmp.lt.s32.totalorder %s24, 0
        %s762 = scalar_select %p761, %s24, 0
        %s763 = sadd.s32 %s762, %s760
        %s764 = scalar_lea.vmem %s4, %s763
        // Predicated region
        $region33: #{tpu_custom_call.1} parent=31 // pred_check
          %p765 = pneg %p121
        $region34: #{tpu_custom_call.1} parent=31 // pred_check_branch
          %767 = sbr.rel (%p765) target = $region36
        $region35: #{tpu_custom_call.1} parent=31 // pred_region
          %s768 = smul.u32 2, %s24
          %770 = vsyncadd %s755, 0
          %s771 = smul.addr %s23, 8
          %s772 = sadd.s32 %s768, %s771
          %s773 = smul.addr %s772, 8
          %s774 = scalar_lea.hbm %s3, %s773
          %s775 = sshll.u32 %s758, 4
          %s776 = int_to_ptr.vmem [resolvable:$true] %s775
          %s777 = sshll.u32 %s774, 4
          %s778 = int_to_ptr.hbm [resolvable:$true] %s777
          %783 = dma.vmem_to_hbm [thread:$0]  %s776, 1024, %s778, %s755, 256, 256, 16
        $region36: #{tpu_custom_call.1} parent=31 // pred_fallthru
          _
        // Predicated region
        $region37: #{tpu_custom_call.1} parent=31 // pred_check
          %p784 = pneg %p149
        $region38: #{tpu_custom_call.1} parent=31 // pred_check_branch
          %786 = sbr.rel (%p784) target = $region40
        $region39: #{tpu_custom_call.1} parent=31 // pred_region
          _
        $region40: #{tpu_custom_call.1} parent=31 // pred_fallthru
          _
      $region32: #{tpu_custom_call.1} parent=5 // pred_fallthru
        _
      %p787 = scmp.le.s32.totalorder 2, %s14
      // Predicated region
      $region41: #{tpu_custom_call.1} parent=5 // pred_check
        %p788 = pneg %p787
      $region42: #{tpu_custom_call.1} parent=5 // pred_check_branch
        %790 = sbr.rel (%p788) target = $region44
      $region43: #{tpu_custom_call.1} parent=5 // pred_region
        %s791 = ssub.s32 %s14, 2
        // Predicated region
        $region45: #{tpu_custom_call.1} parent=43 // pred_check
          %p792 = pneg %p127
        $region46: #{tpu_custom_call.1} parent=43 // pred_check_branch
          %794 = sbr.rel (%p792) target = $region48
        $region47: #{tpu_custom_call.1} parent=43 // pred_region
          %s795 = sand.u32 %s112, 1
          %s796 = scalar_lea.sflag [#allocation3], %s795
          %s797 = sand.u32 %s112, 1
          %s798 = smul.addr %s797, 64
          %s799 = scalar_lea.vmem [#allocation2], %s798
          %801 = dma.done %s796, 1024
        $region48: #{tpu_custom_call.1} parent=43 // pred_fallthru
          _
        // Predicated region
        $region49: #{tpu_custom_call.1} parent=43 // pred_check
          %p802 = pneg %p155
        $region50: #{tpu_custom_call.1} parent=43 // pred_check_branch
          %804 = sbr.rel (%p802) target = $region52
        $region51: #{tpu_custom_call.1} parent=43 // pred_region
          %p805 = scmp.lt.s32.totalorder %s25, 1
          %s806 = scalar_select %p805, %s25, 1
          %p807 = scmp.lt.s32.totalorder %s26, 0
          %s808 = scalar_select %p807, %s26, 0
          %s809 = sadd.s32 %s808, %s806
          %s810 = scalar_lea.vmem %s4, %s809
        $region52: #{tpu_custom_call.1} parent=43 // pred_fallthru
          _
      $region44: #{tpu_custom_call.1} parent=5 // pred_fallthru
        _
    $region6: #{tpu_custom_call.1} parent=1 // loop_footer
      %s18 = sadd.s32 1, %s14
    $region7: #{tpu_custom_call.1} parent=1 // loop_footer_branch
      %13 = sbr.rel target = $region3
    $region8: #{tpu_custom_call.1} parent=1 // loop_exit
      _
    %811 = vsyncpa [#allocation3], 1
    %s812 = scalar_lea.sflag [#allocation3], 1
    %813 = vsyncpa %s812, 1

</llo_original>
